<compile_context>
chip_gen: v5e
topology: v5e:2x2
jax: 0.10.0
libtpu: 0.0.40
codegen_flags: <defaults>
</compile_context>

<pallas_src>
import functools

import jax
import jax.numpy as jnp
from jax.experimental import pallas as pl
from jax.experimental.pallas import tpu as pltpu


# --------------------------------------------------------------------------
# Kernel: one fused matmul -> gates -> cell/hide, lane-dense (P_pad, tm) out.
# --------------------------------------------------------------------------
def _lstm0_kernel(xt_ref, w_ref, cell_ref, hide_ref):
    # xt_ref  : (1, K+1, tm)      im2col columns for this batch/tile,
    #                             last feature row == 1 (bias fold)
    # w_ref   : (3*P_pad, K+1)    [wg; wi; wo] flattened, bias as last column
    # outputs : (1, P_pad, tm)    lane-dense — tm is a multiple of 128
    pre = jnp.dot(w_ref[...], xt_ref[0],
                  preferred_element_type=jnp.float32)        # (3*P_pad, tm) on MXU
    P = cell_ref.shape[1]                                    # P_pad, multiple of 8
    g = jnp.tanh(pre[0:P, :])
    i = jax.nn.sigmoid(pre[P:2 * P, :])
    o = jax.nn.sigmoid(pre[2 * P:3 * P, :])
    cell = jnp.tanh(g * i)
    hide = o * cell
    cell_ref[0] = cell
    hide_ref[0] = hide


# --------------------------------------------------------------------------
# Glue: batched im2col (feature-major rows), fused/bias-folded weight prep.
# --------------------------------------------------------------------------
def _im2col_nchw(x, kh, kw, pad):
    """x: (B, C, H, W) -> (B, C*kh*kw, H*W); row order (c, dh, dw)."""
    B, C, H, W = x.shape
    x_pad = jnp.pad(x, ((0, 0), (0, 0), (pad, pad), (pad, pad)))
    taps = []
    for dh in range(kh):
        for dw in range(kw):
            taps.append(x_pad[:, :, dh:dh + H, dw:dw + W])   # (B, C, H, W)
    p = jnp.stack(taps, axis=2)                              # (B, C, kh*kw, H, W)
    return p.reshape(B, C * kh * kw, H * W)


@functools.partial(jax.jit, static_argnames=("kernel_size", "padding", "tm"))
def lstm0_forward(x, params, kernel_size, padding, tm=None):
    """x: (B, C_in, H, W) NCHW float32.  Returns (cell, hide), both NCHW."""
    B, C, H, W = x.shape
    kh = kw = kernel_size
    P = params["wg"].shape[0]
    K = C * kh * kw
    HW = H * W
    P_pad = ((P + 7) // 8) * 8

    # --- tile selection: lane-dense (multiple of 128), >= 2 grid steps total
    if tm is None:
        want_tiles = 1 if B >= 2 else 2
        per = (HW + want_tiles - 1) // want_tiles
        tm = 128 * ((per + 127) // 128)
        tm = max(128, min(tm, 2048))
    n_hw_tiles = pl.cdiv(HW, tm)
    HW_pad = n_hw_tiles * tm

    # --- input: batched im2col with a folded-bias ones row, lane-padded
    xt = _im2col_nchw(x.astype(jnp.float32), kh, kw, padding)            # (B, K, HW)
    xt = jnp.concatenate([xt, jnp.ones((B, 1, HW), jnp.float32)], 1)     # (B, K+1, HW)
    if HW_pad != HW:
        xt = jnp.pad(xt, ((0, 0), (0, 0), (0, HW_pad - HW)))

    # --- fused weights: (P, K) filters + bias column, sublane-padded to P_pad
    def _prep(w, b):
        wf = w.reshape(P, K).astype(jnp.float32)
        wb = jnp.concatenate([wf, b.reshape(P, 1).astype(jnp.float32)], 1)  # (P, K+1)
        if P_pad != P:
            wb = jnp.pad(wb, ((0, P_pad - P), (0, 0)))
        return wb

    w_all = jnp.concatenate([_prep(params["wg"], params["bg"]),
                             _prep(params["wi"], params["bi"]),
                             _prep(params["wo"], params["bo"])], axis=0)  # (3*P_pad, K+1)

    xt_spec = pl.BlockSpec((1, K + 1, tm), lambda b, m: (b, 0, m))
    w_spec = pl.BlockSpec((3 * P_pad, K + 1), lambda b, m: (0, 0))
    out_spec = pl.BlockSpec((1, P_pad, tm), lambda b, m: (b, 0, m))

    cell_t, hide_t = pl.pallas_call(
        _lstm0_kernel,
        out_shape=(jax.ShapeDtypeStruct((B, P_pad, HW_pad), jnp.float32),
                   jax.ShapeDtypeStruct((B, P_pad, HW_pad), jnp.float32)),
        grid_spec=pltpu.PrefetchScalarGridSpec(
            num_scalar_prefetch=0,
            grid=(B, n_hw_tiles),
            in_specs=[xt_spec, w_spec],
            out_specs=[out_spec, out_spec],
        ),
        compiler_params=pltpu.CompilerParams(
            dimension_semantics=("parallel", "parallel")),
    )(xt, w_all)

    # (B, P_pad, HW_pad) -> (B, P, H, W): pure slice + reshape, no transpose.
    cell = cell_t[:, :P, :HW].reshape(B, P, H, W)
    hide = hide_t[:, :P, :HW].reshape(B, P, H, W)
    return cell, hide


# --------------------------------------------------------------------------
# Pure-JAX reference matching the PyTorch module semantics.
# --------------------------------------------------------------------------
def _reference_forward(x, params, kernel_size, padding):
    dn = jax.lax.conv_dimension_numbers(x.shape, params["wg"].shape,
                                        ("NCHW", "OIHW", "NCHW"))
    pad = [(padding, padding), (padding, padding)]

    def conv(w, b):
        y = jax.lax.conv_general_dilated(x, w, (1, 1), pad, dimension_numbers=dn)
        return y + b.reshape(1, -1, 1, 1)

    g = jnp.tanh(conv(params["wg"], params["bg"]))
    i = jax.nn.sigmoid(conv(params["wi"], params["bi"]))
    o = jax.nn.sigmoid(conv(params["wo"], params["bo"]))
    cell = jnp.tanh(g * i)
    hide = o * cell
    return cell, hide


if __name__ == "__main__":
    # Small shapes consistent with the module: Conv2d(inplanes, planes, k, pad)
    B, C_in, H, W = 2, 4, 16, 16
    planes, kernel_size, padding = 8, 3, 1

    key = jax.random.PRNGKey(0)
    k = jax.random.split(key, 7)
    x = jax.random.normal(k[0], (B, C_in, H, W), dtype=jnp.float32)

    scale = 0.1
    params = {
        "wg": scale * jax.random.normal(k[1], (planes, C_in, kernel_size, kernel_size), jnp.float32),
        "wi": scale * jax.random.normal(k[2], (planes, C_in, kernel_size, kernel_size), jnp.float32),
        "wo": scale * jax.random.normal(k[3], (planes, C_in, kernel_size, kernel_size), jnp.float32),
        "bg": scale * jax.random.normal(k[4], (planes,), jnp.float32),
        "bi": scale * jax.random.normal(k[5], (planes,), jnp.float32),
        "bo": scale * jax.random.normal(k[6], (planes,), jnp.float32),
    }

    cell, hide = lstm0_forward(x, params, kernel_size, padding)
    jax.block_until_ready((cell, hide))

    cell_ref, hide_ref = _reference_forward(x, params, kernel_size, padding)
    assert cell.shape == (B, planes, H, W) and hide.shape == (B, planes, H, W)
    assert jnp.allclose(cell, cell_ref, atol=1e-5, rtol=1e-5)
    assert jnp.allclose(hide, hide_ref, atol=1e-5, rtol=1e-5)

    print("KERNEL_OK")
</pallas_src>

<mosaic_0001>
module attributes {stable_mosaic.version = 11 : i64} {
  func.func @_lstm0_kernel(%arg0: i32, %arg1: i32, %arg2: memref<1x37x256xf32, #tpu.memory_space<vmem>>, %arg3: memref<24x37xf32, #tpu.memory_space<vmem>>, %arg4: memref<1x8x256xf32, #tpu.memory_space<vmem>>, %arg5: memref<1x8x256xf32, #tpu.memory_space<vmem>>) attributes {dimension_semantics = [#tpu.dimension_semantics<parallel>, #tpu.dimension_semantics<parallel>], iteration_bounds = array<i64: 2, 1>, scalar_prefetch = 0 : i64, scratch_operands = 0 : i64, tpu.core_type = #tpu.core_type<tc>, window_params = [{transform_indices = @transform_0, window_bounds = array<i64: 1, 37, 256>}, {pipeline_mode = #tpu.pipeline_mode<synchronous>, transform_indices = @transform_1, window_bounds = array<i64: 24, 37>}, {transform_indices = @transform_2, window_bounds = array<i64: 1, 8, 256>}, {transform_indices = @transform_3, window_bounds = array<i64: 1, 8, 256>}]} {
    %c0 = arith.constant 0 : index
    %c0_0 = arith.constant 0 : index
    %0 = vector.load %arg3[%c0, %c0_0] : memref<24x37xf32, #tpu.memory_space<vmem>>, vector<24x37xf32>
    %c0_1 = arith.constant 0 : index
    %c0_2 = arith.constant 0 : index
    %c0_3 = arith.constant 0 : index
    %1 = vector.load %arg2[%c0_1, %c0_2, %c0_3] : memref<1x37x256xf32, #tpu.memory_space<vmem>>, vector<1x37x256xf32>
    %2 = vector.shape_cast %1 : vector<1x37x256xf32> to vector<37x256xf32>
    %cst = arith.constant dense<0.000000e+00> : vector<24x256xf32>
    %3 = tpu.matmul %0, %2, %cst {dimension_numbers = #tpu.dot_dimension_numbers<[1], [0], [0], [1], [0, 0, 1, 1], [], []>} : vector<24x37xf32>, vector<37x256xf32>, vector<24x256xf32> -> vector<24x256xf32>
    %4 = vector.extract_strided_slice %3 {offsets = [0, 0], sizes = [8, 256], strides = [1, 1]} : vector<24x256xf32> to vector<8x256xf32>
    %5 = math.tanh %4 : vector<8x256xf32>
    %6 = vector.extract_strided_slice %3 {offsets = [8, 0], sizes = [8, 256], strides = [1, 1]} : vector<24x256xf32> to vector<8x256xf32>
    %7 = arith.negf %6 : vector<8x256xf32>
    %8 = math.exp %7 : vector<8x256xf32>
    %cst_4 = arith.constant 1.000000e+00 : f32
    %9 = vector.broadcast %cst_4 : f32 to vector<8x256xf32>
    %10 = arith.addf %9, %8 : vector<8x256xf32>
    %11 = arith.divf %9, %10 : vector<8x256xf32>
    %12 = vector.extract_strided_slice %3 {offsets = [16, 0], sizes = [8, 256], strides = [1, 1]} : vector<24x256xf32> to vector<8x256xf32>
    %13 = arith.negf %12 : vector<8x256xf32>
    %14 = math.exp %13 : vector<8x256xf32>
    %cst_5 = arith.constant 1.000000e+00 : f32
    %15 = vector.broadcast %cst_5 : f32 to vector<8x256xf32>
    %16 = arith.addf %15, %14 : vector<8x256xf32>
    %17 = arith.divf %15, %16 : vector<8x256xf32>
    %18 = arith.mulf %5, %11 : vector<8x256xf32>
    %19 = math.tanh %18 : vector<8x256xf32>
    %20 = arith.mulf %17, %19 : vector<8x256xf32>
    %c0_6 = arith.constant 0 : index
    %c0_7 = arith.constant 0 : index
    %c0_8 = arith.constant 0 : index
    %21 = vector.load %arg4[%c0_6, %c0_7, %c0_8] : memref<1x8x256xf32, #tpu.memory_space<vmem>>, vector<1x8x256xf32>
    %22 = vector.shape_cast %21 : vector<1x8x256xf32> to vector<8x256xf32>
    %23 = vector.shape_cast %19 : vector<8x256xf32> to vector<1x8x256xf32>
    tpu.vector_store %arg4[%c0_6, %c0_7, %c0_8], %23 {strides = array<i32>} : memref<1x8x256xf32, #tpu.memory_space<vmem>>, vector<1x8x256xf32>,
    %c0_9 = arith.constant 0 : index
    %c0_10 = arith.constant 0 : index
    %c0_11 = arith.constant 0 : index
    %24 = vector.load %arg5[%c0_9, %c0_10, %c0_11] : memref<1x8x256xf32, #tpu.memory_space<vmem>>, vector<1x8x256xf32>
    %25 = vector.shape_cast %24 : vector<1x8x256xf32> to vector<8x256xf32>
    %26 = vector.shape_cast %20 : vector<8x256xf32> to vector<1x8x256xf32>
    tpu.vector_store %arg5[%c0_9, %c0_10, %c0_11], %26 {strides = array<i32>} : memref<1x8x256xf32, #tpu.memory_space<vmem>>, vector<1x8x256xf32>,
    return
  }
  func.func @transform_0(%arg0: i32, %arg1: i32) -> (i32, i32, i32) {
    %c0_i32 = arith.constant 0 : i32
    %c0_i32_0 = arith.constant 0 : i32
    return %arg0, %c0_i32, %arg1 : i32, i32, i32
  }
  func.func @transform_1(%arg0: i32, %arg1: i32) -> (i32, i32) {
    %c0_i32 = arith.constant 0 : i32
    %c0_i32_0 = arith.constant 0 : i32
    %c0_i32_1 = arith.constant 0 : i32
    return %c0_i32, %c0_i32_0 : i32, i32
  }
  func.func @transform_2(%arg0: i32, %arg1: i32) -> (i32, i32, i32) {
    %c0_i32 = arith.constant 0 : i32
    %c0_i32_0 = arith.constant 0 : i32
    return %arg0, %c0_i32, %arg1 : i32, i32, i32
  }
  func.func @transform_3(%arg0: i32, %arg1: i32) -> (i32, i32, i32) {
    %c0_i32 = arith.constant 0 : i32
    %c0_i32_0 = arith.constant 0 : i32
    return %arg0, %c0_i32, %arg1 : i32, i32, i32
  }
}

</mosaic_0001>

<llo_original>
// kernel: lstm0_forward.1
$region0: #{lstm0_forward.1}
  #allocation0 [shape = 'u32[]', space=smem, size = 0x4, offset = 0x4, fixed_abs, tag = 'smem constant byte address 0x4 - core index']
  #allocation1 [shape = 'u32[72,128]{1,0:T(1,128)}', space=vmem, size = 0x9000, scoped, tag = 'internal scratch']
  %s0 = inlined_call_operand.vmem [shape: f32[2,37,256], index: 0, kind: input, shape index: {}]
  %s1 = inlined_call_operand.vmem [shape: f32[24,37], index: 1, kind: input, shape index: {}]
  %s2 = inlined_call_operand.vmem [shape: f32[2,8,256], index: 2, kind: output, shape index: {0}]
  %s3 = inlined_call_operand.vmem [shape: f32[2,8,256], index: 3, kind: output, shape index: {1}]
  %4 = xla_tuple %s2, %s3
  %s5 = sld [smem:[#allocation0]]
  $region49: #{lstm0_forward.1} parent=0
    _
  %s7 = ssub.s32 1, %s5
  %s8 = scalar_select 0, %s7, %s5
  loop: start=0, step=1, limit=4
  $region2: #{lstm0_forward.1} parent=0 // loop_pre_header
    _
  $region3: #{lstm0_forward.1} parent=0 // loop_header
    %s10 = sphi 0, %s14
    %p11 = scmp.ge.s32.totalorder %s10, 4
    %s17 = sphi 0, %s29
    %s18 = sphi 0, %s25
    %s19 = sphi 0, %s17
    %s20 = sphi 0, %s18
    %s21 = sphi 0, %s19
    %s22 = sphi 0, %s20
    %s34 = sphi 0, %s36
    %s37 = sphi 0, %s34
    %s38 = sphi 0, %s37
    %s54 = sphi 0, %s38
    %s58 = sphi 0, %s58
    %s60 = sphi 0, %s58
    %s61 = sphi 0, %s60
    %s75 = sphi 0, %s61
    %s83 = sphi 0, %s85
    %s86 = sphi 0, %s83
    %s87 = sphi 0, %s86
    %s103 = sphi 0, %s87
    %s111 = sphi 0, %s113
    %s114 = sphi 0, %s111
    %s115 = sphi 0, %s114
    %s131 = sphi 0, %s115
  $region4: #{lstm0_forward.1} parent=0 // loop_header_branch
    %13 = sbr.rel (%p11) target = $region8
  $region5: #{lstm0_forward.1} parent=0 // loop_body
    %s15 = ssub.s32 %s10, 1
    %s16 = ssub.s32 %s10, 2
    %s23 = sadd.s32 1, %s18
    %p24 = scmp.ge.s32.totalorder %s23, 1
    %s25 = scalar_select %p24, 0, %s23
    %s26 = sadd.s32 1, %s17
    %s27 = scalar_select %p24, %s26, %s17
    %p28 = scmp.ge.s32.totalorder %s27, 2
    %s29 = scalar_select %p28, 0, %s27
    %s30 = ssub.s32 %s17, %s29
    %s31 = ssub.s32 %s18, %s25
    %s32 = sor.u32 %s30, %s31
    %p33 = scmp.eq.s32.totalorder %s32, 0
    %s35 = sadd.s32 %s34, 1
    %s36 = scalar_select %p33, %s34, %s35
    %p39 = pneg %p33
    %p40 = scmp.eq.s32.totalorder %s10, 1
    %p41 = por %p39, %p40
    %p42 = scmp.ne.s32.totalorder %s34, %s37
    %p43 = scmp.eq.s32.totalorder %s10, 0
    %p44 = por %p42, %p43
    %p45 = scmp.ne.s32.totalorder %s34, %s37
    %p46 = scmp.eq.s32.totalorder %s15, 1
    %p47 = por %p45, %p46
    %p48 = scmp.ne.s32.totalorder %s37, %s38
    %p49 = scmp.eq.s32.totalorder %s15, 0
    %p50 = por %p48, %p49
    %p51 = scmp.ne.s32.totalorder %s37, %s38
    %p52 = scmp.eq.s32.totalorder %s16, 1
    %p53 = por %p51, %p52
    %p55 = scmp.ne.s32.totalorder %s38, %s54
    %p56 = scmp.eq.s32.totalorder %s16, 0
    %p57 = por %p55, %p56
    %s59 = sadd.s32 %s58, 1
    %p62 = scmp.eq.s32.totalorder %s10, 1
    %p63 = scmp.ne.s32.totalorder %s58, %s60
    %p64 = scmp.eq.s32.totalorder %s10, 0
    %p65 = por %p63, %p64
    %p66 = scmp.ne.s32.totalorder %s58, %s60
    %p67 = scmp.eq.s32.totalorder %s15, 1
    %p68 = por %p66, %p67
    %p69 = scmp.ne.s32.totalorder %s60, %s61
    %p70 = scmp.eq.s32.totalorder %s15, 0
    %p71 = por %p69, %p70
    %p72 = scmp.ne.s32.totalorder %s60, %s61
    %p73 = scmp.eq.s32.totalorder %s16, 1
    %p74 = por %p72, %p73
    %p76 = scmp.ne.s32.totalorder %s61, %s75
    %p77 = scmp.eq.s32.totalorder %s16, 0
    %p78 = por %p76, %p77
    %s79 = ssub.s32 %s17, %s29
    %s80 = ssub.s32 %s18, %s25
    %s81 = sor.u32 %s79, %s80
    %p82 = scmp.eq.s32.totalorder %s81, 0
    %s84 = sadd.s32 %s83, 1
    %s85 = scalar_select %p82, %s83, %s84
    %p88 = pneg %p82
    %p89 = scmp.eq.s32.totalorder %s10, 1
    %p90 = por %p88, %p89
    %p91 = scmp.ne.s32.totalorder %s83, %s86
    %p92 = scmp.eq.s32.totalorder %s10, 0
    %p93 = por %p91, %p92
    %p94 = scmp.ne.s32.totalorder %s83, %s86
    %p95 = scmp.eq.s32.totalorder %s15, 1
    %p96 = por %p94, %p95
    %p97 = scmp.ne.s32.totalorder %s86, %s87
    %p98 = scmp.eq.s32.totalorder %s15, 0
    %p99 = por %p97, %p98
    %p100 = scmp.ne.s32.totalorder %s86, %s87
    %p101 = scmp.eq.s32.totalorder %s16, 1
    %p102 = por %p100, %p101
    %p104 = scmp.ne.s32.totalorder %s87, %s103
    %p105 = scmp.eq.s32.totalorder %s16, 0
    %p106 = por %p104, %p105
    %s107 = ssub.s32 %s17, %s29
    %s108 = ssub.s32 %s18, %s25
    %s109 = sor.u32 %s107, %s108
    %p110 = scmp.eq.s32.totalorder %s109, 0
    %s112 = sadd.s32 %s111, 1
    %s113 = scalar_select %p110, %s111, %s112
    %p116 = pneg %p110
    %p117 = scmp.eq.s32.totalorder %s10, 1
    %p118 = por %p116, %p117
    %p119 = scmp.ne.s32.totalorder %s111, %s114
    %p120 = scmp.eq.s32.totalorder %s10, 0
    %p121 = por %p119, %p120
    %p122 = scmp.ne.s32.totalorder %s111, %s114
    %p123 = scmp.eq.s32.totalorder %s15, 1
    %p124 = por %p122, %p123
    %p125 = scmp.ne.s32.totalorder %s114, %s115
    %p126 = scmp.eq.s32.totalorder %s15, 0
    %p127 = por %p125, %p126
    %p128 = scmp.ne.s32.totalorder %s114, %s115
    %p129 = scmp.eq.s32.totalorder %s16, 1
    %p130 = por %p128, %p129
    %p132 = scmp.ne.s32.totalorder %s115, %s131
    %p133 = scmp.eq.s32.totalorder %s16, 0
    %p134 = por %p132, %p133
    %p135 = scmp.le.s32.totalorder 1, %s10
    %p136 = scmp.lt.s32.totalorder %s10, 3
    %p137 = pnand %p135, %p136
    %p138 = pneg %p137
    // Predicated region
    $region9: #{lstm0_forward.1} parent=5 // pred_check
      _
    $region10: #{lstm0_forward.1} parent=5 // pred_check_branch
      %140 = sbr.rel (%p137) target = $region12
    $region11: #{lstm0_forward.1} parent=5 // pred_region
      %s141 = ssub.s32 %s10, 1
      // Predicated region
      $region13: #{lstm0_forward.1} parent=11 // pred_check
        %p142 = pneg %p71
      $region14: #{lstm0_forward.1} parent=11 // pred_check_branch
        %144 = sbr.rel (%p142) target = $region16
      $region15: #{lstm0_forward.1} parent=11 // pred_region
        _
      $region16: #{lstm0_forward.1} parent=11 // pred_fallthru
        _
    $region12: #{lstm0_forward.1} parent=5 // pred_fallthru
      _
    %p145 = scmp.lt.s32.totalorder %s10, 2
    // Predicated region
    $region17: #{lstm0_forward.1} parent=5 // pred_check
      %p146 = pneg %p145
    $region18: #{lstm0_forward.1} parent=5 // pred_check_branch
      %148 = sbr.rel (%p146) target = $region20
    $region19: #{lstm0_forward.1} parent=5 // pred_region
      // Predicated region
      $region21: #{lstm0_forward.1} parent=19 // pred_check
        %p149 = pneg %p44
      $region22: #{lstm0_forward.1} parent=19 // pred_check_branch
        %151 = sbr.rel (%p149) target = $region24
      $region23: #{lstm0_forward.1} parent=19 // pred_region
        %s152 = smul.u32 2, %s18
        %p153 = scmp.lt.s32.totalorder %s17, 1
        %s154 = scalar_select %p153, %s17, 1
        %p155 = scmp.lt.s32.totalorder %s152, 1
        %s156 = scalar_select %p155, %s152, 1
        %s157 = smul.addr %s154, 10
        %s158 = sadd.s32 %s156, %s157
        %s159 = smul.addr %s158, 8
        %s160 = scalar_lea.vmem %s0, %s159
        %s161 = smul.u32 2, %s18
      $region24: #{lstm0_forward.1} parent=19 // pred_fallthru
        _
    $region20: #{lstm0_forward.1} parent=5 // pred_fallthru
      _
    %p162 = scmp.le.s32.totalorder 1, %s10
    %p163 = scmp.lt.s32.totalorder %s10, 3
    %p164 = pnand %p162, %p163
    %p165 = pneg %p164
    // Predicated region
    $region25: #{lstm0_forward.1} parent=5 // pred_check
      _
    $region26: #{lstm0_forward.1} parent=5 // pred_check_branch
      %167 = sbr.rel (%p164) target = $region28
    $region27: #{lstm0_forward.1} parent=5 // pred_region
      %s168 = ssub.s32 %s10, 1
      %s169 = smul.u32 2, %s20
      %p170 = scmp.lt.s32.totalorder %s19, 1
      %s171 = scalar_select %p170, %s19, 1
      %p172 = scmp.lt.s32.totalorder %s169, 1
      %s173 = scalar_select %p172, %s169, 1
      %s174 = smul.addr %s171, 10
      %s175 = sadd.s32 %s173, %s174
      %s176 = smul.addr %s175, 8
      %s177 = scalar_lea.vmem %s0, %s176
      %p178 = pneg %p50
      %p179 = pneg %p47
      %p180 = pneg %p71
      %p181 = pneg %p68
      %p182 = pneg %p99
      %p183 = pneg %p96
      %s184 = smul.u32 2, %s20
      %p185 = scmp.lt.s32.totalorder %s19, 1
      %s186 = scalar_select %p185, %s19, 1
      %p187 = scmp.lt.s32.totalorder %s184, 1
      %s188 = scalar_select %p187, %s184, 1
      %s189 = smul.addr %s186, 2
      %s190 = sadd.s32 %s188, %s189
      %s191 = smul.addr %s190, 8
      %s192 = scalar_lea.vmem %s2, %s191
      %p193 = pneg %p127
      %p194 = pneg %p124
      %s195 = smul.u32 2, %s20
      %p196 = scmp.lt.s32.totalorder %s19, 1
      %s197 = scalar_select %p196, %s19, 1
      %p198 = scmp.lt.s32.totalorder %s195, 1
      %s199 = scalar_select %p198, %s195, 1
      %s200 = smul.addr %s197, 2
      %s201 = sadd.s32 %s199, %s200
      %s202 = smul.addr %s201, 8
      %s203 = scalar_lea.vmem %s3, %s202
      %s204 = smul.u32 2, %s20
      %p205 = scmp.lt.s32.totalorder %s19, 1
      %s206 = scalar_select %p205, %s19, 1
      %p207 = scmp.lt.s32.totalorder %s204, 1
      %s208 = scalar_select %p207, %s204, 1
      %s209 = smul.addr %s206, 10
      %s210 = sadd.s32 %s208, %s209
      %s211 = smul.addr %s210, 8
      %s212 = scalar_lea.vmem %s0, %s211
      %s213 = smul.u32 2, %s20
      %s214 = smul.u32 2, %s20
      %p215 = scmp.lt.s32.totalorder %s19, 1
      %s216 = scalar_select %p215, %s19, 1
      %p217 = scmp.lt.s32.totalorder %s214, 1
      %s218 = scalar_select %p217, %s214, 1
      %s219 = smul.addr %s216, 2
      %s220 = sadd.s32 %s218, %s219
      %s221 = smul.addr %s220, 8
      %s222 = scalar_lea.vmem %s2, %s221
      %s223 = smul.u32 2, %s20
      %s224 = smul.u32 2, %s20
      %p225 = scmp.lt.s32.totalorder %s19, 1
      %s226 = scalar_select %p225, %s19, 1
      %p227 = scmp.lt.s32.totalorder %s224, 1
      %s228 = scalar_select %p227, %s224, 1
      %s229 = smul.addr %s226, 2
      %s230 = sadd.s32 %s228, %s229
      %s231 = smul.addr %s230, 8
      %s232 = scalar_lea.vmem %s3, %s231
      %s233 = smul.u32 2, %s20
      %v234 = vld [vmem:[%s1] sm:$0xff]
      %v235 = vld [vmem:[%s1 + $0x8] sm:$0xff]
      %v236 = vld [vmem:[%s1 + $0x10] sm:$0xff]
      %v237 = vld [vmem:[%s212] sm:$0xff]
      %v238 = vld [vmem:[%s212 + $0x8] sm:$0xff]
      %v239 = vld [vmem:[%s212 + $0x10] sm:$0xff]
      %v240 = vld [vmem:[%s212 + $0x18] sm:$0xff]
      %v241 = vld [vmem:[%s212 + $0x20] sm:$0xff]
      %v242 = vld [vmem:[%s212 + $0x28] sm:$0xff]
      %v243 = vld [vmem:[%s212 + $0x30] sm:$0xff]
      %v244 = vld [vmem:[%s212 + $0x38] sm:$0xff]
      %v245 = vld [vmem:[%s212 + $0x40] sm:$0x1f]
      %v246 = vld [vmem:[%s212 + $0x48] sm:$0x1f]
      %vm247 = vcmask 302080
      %v249 = vsel %vm247, %v234, 0
      %v252 = vsel %vm247, %v235, 0
      %v255 = vsel %vm247, %v236, 0
      %vm257 = vcmask 1044480
      %v259 = vsel %vm257, %v245, 0
      %v262 = vsel %vm257, %v246, 0
      %264 = vmatpush.msra.mxu0 0.0
      %265 = vmatpush.msra.mxu0 0.0
      %266 = vmatpush.msra.mxu0 0.0
      %267 = vmatpush.msra.mxu0 0.0
      %268 = vmatpush.msra.mxu0 0.0
      %269 = vmatpush.msra.mxu0 0.0
      %270 = vmatpush.msra.mxu0 0.0
      %271 = vmatpush.msra.mxu0 0.0
      %272 = vmatpush.msra.mxu0 0.0
      %273 = vmatpush.msra.mxu0 0.0
      %274 = vmatpush.msra.mxu0 0.0
      %275 = vmatpush.msra.mxu0 %v259
      %276 = vmatpush.msra.mxu0 %v243
      %277 = vmatpush.msra.mxu0 %v241
      %278 = vmatpush.msra.mxu0 %v239
      %279 = vmatpush.msra.mxu0 %v237
      %280 = vmatmul.f32.gmra.mxu0 %v249
      %v281 = vpop.f32.mrf.mxu0
      %v282 = vadd.f32 0.0, %v281
      %283 = vmatmul.f32.gmra.mxu0 %v252
      %v284 = vpop.f32.mrf.mxu0
      %v285 = vadd.f32 0.0, %v284
      %286 = vmatmul.f32.gmra.mxu0 %v255
      %v287 = vpop.f32.mrf.mxu0
      %v288 = vadd.f32 0.0, %v287
      %289 = vdwg.mxu0
      %290 = vmatpush.msra.mxu0 0.0
      %291 = vmatpush.msra.mxu0 0.0
      %292 = vmatpush.msra.mxu0 0.0
      %293 = vmatpush.msra.mxu0 0.0
      %294 = vmatpush.msra.mxu0 0.0
      %295 = vmatpush.msra.mxu0 0.0
      %296 = vmatpush.msra.mxu0 0.0
      %297 = vmatpush.msra.mxu0 0.0
      %298 = vmatpush.msra.mxu0 0.0
      %299 = vmatpush.msra.mxu0 0.0
      %300 = vmatpush.msra.mxu0 0.0
      %301 = vmatpush.msra.mxu0 %v262
      %302 = vmatpush.msra.mxu0 %v244
      %303 = vmatpush.msra.mxu0 %v242
      %304 = vmatpush.msra.mxu0 %v240
      %305 = vmatpush.msra.mxu0 %v238
      %306 = vmatmul.f32.gmra.mxu0 %v249
      %v307 = vpop.f32.mrf.mxu0
      %v308 = vadd.f32 0.0, %v307
      %309 = vmatmul.f32.gmra.mxu0 %v252
      %v310 = vpop.f32.mrf.mxu0
      %v311 = vadd.f32 0.0, %v310
      %312 = vmatmul.f32.gmra.mxu0 %v255
      %v313 = vpop.f32.mrf.mxu0
      %v314 = vadd.f32 0.0, %v313
      %315 = vdwg.mxu0
      %v316 = vtanh.pop %v282
      %v317 = vtanh.pop %v308
      %v318 = vxor.u32 %v285, 2147483648
      %v319 = vxor.u32 %v311, 2147483648
      %v320 = vmul.f32 %v318, 1.442695
      %v321 = vpow.pop %v320
      %v322 = vmul.f32 %v319, 1.442695
      %v323 = vpow.pop %v322
      %v324 = vadd.f32 %v321, 1.0
      %v325 = vadd.f32 %v323, 1.0
      %v326 = vrcp.pop %v324
      %v327 = vmul.f32 %v324, %v326
      %v328 = vsub.f32 1.0, %v327
      %v329 = vmul.f32 %v326, %v328
      %v330 = vadd.f32 %v326, %v329
      %vm331 = vweird.f32 %v324
      %vm332 = vweird.f32 %v326
      %vm333 = vmor %vm331, %vm332
      %v334 = vsel %vm333, %v326, %v330
      %v335 = vand.u32 2147483647, %v324
      %vm336 = vcmp.eq.f32.partialorder %v335, 8.507059e+37
      %v337 = vand.u32 %v324, 2147483648
      %v338 = vor.u32 1.1754944e-38, %v337
      %v339 = vsel %vm336, %v338, %v334
      %v340 = vmul.f32 1.0, %v339
      %v341 = vrcp.pop %v325
      %v342 = vmul.f32 %v325, %v341
      %v343 = vsub.f32 1.0, %v342
      %v344 = vmul.f32 %v341, %v343
      %v345 = vadd.f32 %v341, %v344
      %vm346 = vweird.f32 %v325
      %vm347 = vweird.f32 %v341
      %vm348 = vmor %vm346, %vm347
      %v349 = vsel %vm348, %v341, %v345
      %v350 = vand.u32 2147483647, %v325
      %vm351 = vcmp.eq.f32.partialorder %v350, 8.507059e+37
      %v352 = vand.u32 %v325, 2147483648
      %v353 = vor.u32 1.1754944e-38, %v352
      %v354 = vsel %vm351, %v353, %v349
      %v355 = vmul.f32 1.0, %v354
      %v356 = vxor.u32 %v288, 2147483648
      %v357 = vxor.u32 %v314, 2147483648
      %v358 = vmul.f32 %v356, 1.442695
      %v359 = vpow.pop %v358
      %v360 = vmul.f32 %v357, 1.442695
      %v361 = vpow.pop %v360
      %v362 = vadd.f32 %v359, 1.0
      %v363 = vadd.f32 %v361, 1.0
      %v364 = vrcp.pop %v362
      %v365 = vmul.f32 %v362, %v364
      %v366 = vsub.f32 1.0, %v365
      %v367 = vmul.f32 %v364, %v366
      %v368 = vadd.f32 %v364, %v367
      %vm369 = vweird.f32 %v362
      %vm370 = vweird.f32 %v364
      %vm371 = vmor %vm369, %vm370
      %v372 = vsel %vm371, %v364, %v368
      %v373 = vand.u32 2147483647, %v362
      %vm374 = vcmp.eq.f32.partialorder %v373, 8.507059e+37
      %v375 = vand.u32 %v362, 2147483648
      %v376 = vor.u32 1.1754944e-38, %v375
      %v377 = vsel %vm374, %v376, %v372
      %v378 = vmul.f32 1.0, %v377
      %v379 = vrcp.pop %v363
      %v380 = vmul.f32 %v363, %v379
      %v381 = vsub.f32 1.0, %v380
      %v382 = vmul.f32 %v379, %v381
      %v383 = vadd.f32 %v379, %v382
      %vm384 = vweird.f32 %v363
      %vm385 = vweird.f32 %v379
      %vm386 = vmor %vm384, %vm385
      %v387 = vsel %vm386, %v379, %v383
      %v388 = vand.u32 2147483647, %v363
      %vm389 = vcmp.eq.f32.partialorder %v388, 8.507059e+37
      %v390 = vand.u32 %v363, 2147483648
      %v391 = vor.u32 1.1754944e-38, %v390
      %v392 = vsel %vm389, %v391, %v387
      %v393 = vmul.f32 1.0, %v392
      %v394 = vmul.f32 %v316, %v340
      %v395 = vmul.f32 %v317, %v355
      %v396 = vtanh.pop %v394
      %v397 = vtanh.pop %v395
      %v398 = vmul.f32 %v378, %v396
      %v399 = vmul.f32 %v393, %v397
      %400 = vst [vmem:[%s222] sm:$0xff] %v396
      %401 = vst [vmem:[%s222 + $0x8] sm:$0xff] %v397
      %402 = vst [vmem:[%s232] sm:$0xff] %v398
      %403 = vst [vmem:[%s232 + $0x8] sm:$0xff] %v399
      %s404 = smul.u32 2, %s20
      %p405 = scmp.lt.s32.totalorder %s19, 1
      %s406 = scalar_select %p405, %s19, 1
      %p407 = scmp.lt.s32.totalorder %s404, 1
      %s408 = scalar_select %p407, %s404, 1
      %s409 = smul.addr %s406, 2
      %s410 = sadd.s32 %s408, %s409
      %s411 = smul.addr %s410, 8
      %s412 = scalar_lea.vmem %s2, %s411
      %s413 = smul.u32 2, %s20
      %p414 = scmp.lt.s32.totalorder %s19, 1
      %s415 = scalar_select %p414, %s19, 1
      %p416 = scmp.lt.s32.totalorder %s413, 1
      %s417 = scalar_select %p416, %s413, 1
      %s418 = smul.addr %s415, 2
      %s419 = sadd.s32 %s417, %s418
      %s420 = smul.addr %s419, 8
      %s421 = scalar_lea.vmem %s3, %s420
      // Predicated region
      $region29: #{lstm0_forward.1} parent=27 // pred_check
        %p422 = pneg %p96
      $region30: #{lstm0_forward.1} parent=27 // pred_check_branch
        %424 = sbr.rel (%p422) target = $region32
      $region31: #{lstm0_forward.1} parent=27 // pred_region
        %s425 = smul.u32 2, %s20
      $region32: #{lstm0_forward.1} parent=27 // pred_fallthru
        _
      // Predicated region
      $region33: #{lstm0_forward.1} parent=27 // pred_check
        %p426 = pneg %p124
      $region34: #{lstm0_forward.1} parent=27 // pred_check_branch
        %428 = sbr.rel (%p426) target = $region36
      $region35: #{lstm0_forward.1} parent=27 // pred_region
        %s429 = smul.u32 2, %s20
      $region36: #{lstm0_forward.1} parent=27 // pred_fallthru
        _
    $region28: #{lstm0_forward.1} parent=5 // pred_fallthru
      _
    %p430 = scmp.le.s32.totalorder 2, %s10
    // Predicated region
    $region37: #{lstm0_forward.1} parent=5 // pred_check
      %p431 = pneg %p430
    $region38: #{lstm0_forward.1} parent=5 // pred_check_branch
      %433 = sbr.rel (%p431) target = $region40
    $region39: #{lstm0_forward.1} parent=5 // pred_region
      %s434 = ssub.s32 %s10, 2
      // Predicated region
      $region41: #{lstm0_forward.1} parent=39 // pred_check
        %p435 = pneg %p102
      $region42: #{lstm0_forward.1} parent=39 // pred_check_branch
        %437 = sbr.rel (%p435) target = $region44
      $region43: #{lstm0_forward.1} parent=39 // pred_region
        %s438 = smul.u32 2, %s22
        %p439 = scmp.lt.s32.totalorder %s21, 1
        %s440 = scalar_select %p439, %s21, 1
        %p441 = scmp.lt.s32.totalorder %s438, 1
        %s442 = scalar_select %p441, %s438, 1
        %s443 = smul.addr %s440, 2
        %s444 = sadd.s32 %s442, %s443
        %s445 = smul.addr %s444, 8
        %s446 = scalar_lea.vmem %s2, %s445
      $region44: #{lstm0_forward.1} parent=39 // pred_fallthru
        _
      // Predicated region
      $region45: #{lstm0_forward.1} parent=39 // pred_check
        %p447 = pneg %p130
      $region46: #{lstm0_forward.1} parent=39 // pred_check_branch
        %449 = sbr.rel (%p447) target = $region48
      $region47: #{lstm0_forward.1} parent=39 // pred_region
        %s450 = smul.u32 2, %s22
        %p451 = scmp.lt.s32.totalorder %s21, 1
        %s452 = scalar_select %p451, %s21, 1
        %p453 = scmp.lt.s32.totalorder %s450, 1
        %s454 = scalar_select %p453, %s450, 1
        %s455 = smul.addr %s452, 2
        %s456 = sadd.s32 %s454, %s455
        %s457 = smul.addr %s456, 8
        %s458 = scalar_lea.vmem %s3, %s457
      $region48: #{lstm0_forward.1} parent=39 // pred_fallthru
        _
    $region40: #{lstm0_forward.1} parent=5 // pred_fallthru
      _
  $region6: #{lstm0_forward.1} parent=0 // loop_footer
    %s14 = sadd.s32 1, %s10
  $region7: #{lstm0_forward.1} parent=0 // loop_footer_branch
    %9 = sbr.rel target = $region3
  $region8: #{lstm0_forward.1} parent=0 // loop_exit
    _

</llo_original>
